<compile_context>
chip_gen: v7x
topology: tpu7x:2x2x1
jax: 0.10.0
libtpu: 0.0.40
codegen_flags: <defaults>
</compile_context>

<pallas_src>
import functools

import numpy as np

import jax
import jax.numpy as jnp
from jax.experimental import pallas as pl
from jax.experimental.pallas import tpu as pltpu


def _conv_kernel(x_ref, w_ref, b_ref, col_ref, o_ref, patch_ref, *,
                 height, width, ksize):
    # x_ref:     (1, Cin, H*W)        one batch element, H*W on the lane dim
    # w_ref:     (Cout, K*K*Cin)      weight, column order (kh, kw, ci)
    # b_ref:     (Cout, 1)            bias
    # col_ref:   (1, H*W) int32       lane -> W coordinate (f % W), precomputed
    # o_ref:     (1, Cout, H*W)       output tile (lane dense: H*W % 128 == 0)
    # patch_ref: (K*K*Cin, H*W)       im2col VMEM scratch
    cin = x_ref.shape[1]
    hw = height * width
    p = ksize // 2

    x = x_ref[0]                      # (Cin, H*W)
    col = col_ref[...]                # (1, H*W)

    for kh in range(ksize):
        dh = kh - p
        for kw in range(ksize):
            dw = kw - p
            # Tap offset along the flattened H*W axis. Because the H padding is
            # circular, shifting H by dh is exactly a circular shift of the
            # flat axis by dh*W (the zero-W padding is applied as a mask below).
            d = (dh * width + dw) % hw
            if d == 0:
                shifted = x
            else:
                # shifted[:, f] = x[:, (f + d) % hw]  -- circular lane shift
                # (lane slice + concat; lowers to XLU lane shifts, the same
                #  unit pltpu.roll would use).
                shifted = jnp.concatenate([x[:, d:], x[:, :d]], axis=1)
            if dw != 0:
                # Zero-W padding: kill taps whose source column fell off an edge.
                valid = jnp.logical_and(col + dw >= 0, col + dw < width)
                shifted = jnp.where(valid, shifted, jnp.zeros_like(shifted))
            r0 = (kh * ksize + kw) * cin
            patch_ref[r0:r0 + cin, :] = shifted

    # One fused contraction over all K*K*Cin taps (instead of K*K tiny matmuls).
    acc = jnp.dot(w_ref[...], patch_ref[...],
                  preferred_element_type=jnp.float32)       # (Cout, H*W)
    acc = acc + b_ref[...]                                  # (Cout, 1) broadcast
    o_ref[0] = acc.astype(o_ref.dtype)


@functools.partial(jax.jit, static_argnames=("kernel_size",))
def zero_padded_cylindrical_conv2d(x_nchw, weight_oikk, bias, kernel_size):
    """Forward pass matching the PyTorch module (input/output NCHW)."""
    k = kernel_size
    if k % 2 != 1:
        raise NotImplementedError("kernel_size must be odd (padding = k // 2).")
    n, cin, h, w = x_nchw.shape
    cout = weight_oikk.shape[0]
    hw = h * w
    kkcin = k * k * cin

    # Free (bitcast) reshape: NCHW -> (N, Cin, H*W). No transpose, no pad copy.
    x_flat = x_nchw.reshape(n, cin, hw)
    # (Cout, Cin, K, K) -> (Cout, K, K, Cin) -> (Cout, K*K*Cin); column order
    # (kh, kw, ci) matches the im2col scratch row order in the kernel.
    w2d = jnp.transpose(weight_oikk, (0, 2, 3, 1)).reshape(cout, kkcin)
    b2d = bias.reshape(cout, 1)
    # Lane index -> W coordinate (trace-time constant, avoids in-kernel int mod).
    col = jnp.asarray(np.tile(np.arange(w, dtype=np.int32), h)[None, :])

    kernel = functools.partial(_conv_kernel, height=h, width=w, ksize=k)
    bytes_accessed = 4 * (x_flat.size + w2d.size + b2d.size + col.size
                          + n * cout * hw)

    out_flat = pl.pallas_call(
        kernel,
        out_shape=jax.ShapeDtypeStruct((n, cout, hw), x_nchw.dtype),
        grid=(n,),
        in_specs=[
            pl.BlockSpec((1, cin, hw), lambda b: (b, 0, 0)),
            pl.BlockSpec((cout, kkcin), lambda b: (0, 0)),
            pl.BlockSpec((cout, 1), lambda b: (0, 0)),
            pl.BlockSpec((1, hw), lambda b: (0, 0)),
        ],
        out_specs=pl.BlockSpec((1, cout, hw), lambda b: (b, 0, 0)),
        scratch_shapes=[pltpu.VMEM((kkcin, hw), x_nchw.dtype)],
        compiler_params=pltpu.CompilerParams(
            dimension_semantics=("parallel",),
            vmem_limit_bytes=32 * 1024 * 1024,
        ),
        cost_estimate=pl.CostEstimate(
            flops=2 * n * hw * cin * cout * k * k,
            transcendentals=0,
            bytes_accessed=bytes_accessed,
        ),
    )(x_flat, w2d, b2d, col)

    # TODO(synk): for large images (per-image block >> VMEM) add an H-tile grid
    # axis with a circular halo; unnecessary here where a whole image is ~KiB.
    return out_flat.reshape(n, cout, h, w)   # free (bitcast) reshape back


def _reference(x_nchw, weight_oikk, bias, kernel_size):
    """Pure-JAX reference reproducing the PyTorch forward exactly."""
    p = kernel_size // 2
    x = jnp.concatenate(
        [x_nchw[:, :, -p:, :], x_nchw, x_nchw[:, :, :p, :]], axis=2)  # circular H
    x = jnp.pad(x, ((0, 0), (0, 0), (0, 0), (p, p)))                  # zero W
    out = jax.lax.conv_general_dilated(
        x, weight_oikk, window_strides=(1, 1), padding="VALID",
        dimension_numbers=("NCHW", "OIHW", "NCHW"))
    return out + bias[None, :, None, None]


if __name__ == "__main__":
    N, CIN, COUT, H, W, K = 2, 4, 8, 16, 16, 3

    key = jax.random.PRNGKey(0)
    kx, kwt, kb = jax.random.split(key, 3)

    # deterministic Conv2d-style init: U(-1/sqrt(fan_in), 1/sqrt(fan_in))
    bound = 1.0 / (CIN * K * K) ** 0.5
    weight = jax.random.uniform(kwt, (COUT, CIN, K, K), jnp.float32, -bound, bound)
    bias = jax.random.uniform(kb, (COUT,), jnp.float32, -bound, bound)
    x = jax.random.normal(kx, (N, CIN, H, W), jnp.float32)

    out = zero_padded_cylindrical_conv2d(x, weight, bias, K)
    out = jax.block_until_ready(out)

    ref = _reference(x, weight, bias, K)
    assert out.shape == (N, COUT, H, W), out.shape
    assert jnp.allclose(out, ref, atol=1e-5, rtol=1e-5), \
        float(jnp.max(jnp.abs(out - ref)))

    print("KERNEL_OK")
</pallas_src>

<mosaic_0001>
module attributes {stable_mosaic.version = 11 : i64} {
  func.func @_conv_kernel(%arg0: i32, %arg1: memref<1x4x256xf32, #tpu.memory_space<vmem>>, %arg2: memref<8x36xf32, #tpu.memory_space<vmem>>, %arg3: memref<8x1xf32, #tpu.memory_space<vmem>>, %arg4: memref<1x256xi32, #tpu.memory_space<vmem>>, %arg5: memref<1x8x256xf32, #tpu.memory_space<vmem>>, %arg6: memref<36x256xf32, #tpu.memory_space<vmem>>) attributes {dimension_semantics = [#tpu.dimension_semantics<parallel>], iteration_bounds = array<i64: 2>, scalar_prefetch = 0 : i64, scratch_operands = 1 : i64, tpu.core_type = #tpu.core_type<tc>, window_params = [{transform_indices = @transform_0, window_bounds = array<i64: 1, 4, 256>}, {pipeline_mode = #tpu.pipeline_mode<synchronous>, transform_indices = @transform_1, window_bounds = array<i64: 8, 36>}, {pipeline_mode = #tpu.pipeline_mode<synchronous>, transform_indices = @transform_2, window_bounds = array<i64: 8, 1>}, {pipeline_mode = #tpu.pipeline_mode<synchronous>, transform_indices = @transform_3, window_bounds = array<i64: 1, 256>}, {transform_indices = @transform_4, window_bounds = array<i64: 1, 8, 256>}]} {
    %c0 = arith.constant 0 : index
    %c0_0 = arith.constant 0 : index
    %c0_1 = arith.constant 0 : index
    %0 = vector.load %arg1[%c0, %c0_0, %c0_1] : memref<1x4x256xf32, #tpu.memory_space<vmem>>, vector<1x4x256xf32>
    %1 = vector.shape_cast %0 : vector<1x4x256xf32> to vector<4x256xf32>
    %c0_2 = arith.constant 0 : index
    %c0_3 = arith.constant 0 : index
    %2 = vector.load %arg4[%c0_2, %c0_3] : memref<1x256xi32, #tpu.memory_space<vmem>>, vector<1x256xi32>
    %3 = vector.extract_strided_slice %1 {offsets = [0, 239], sizes = [4, 17], strides = [1, 1]} : vector<4x256xf32> to vector<4x17xf32>
    %4 = vector.extract_strided_slice %1 {offsets = [0, 0], sizes = [4, 239], strides = [1, 1]} : vector<4x256xf32> to vector<4x239xf32>
    %5 = tpu.concatenate %3, %4 in 1 : vector<4x17xf32>, vector<4x239xf32> -> vector<4x256xf32>
    %c-1_i32 = arith.constant -1 : i32
    %6 = vector.broadcast %c-1_i32 : i32 to vector<1x256xi32>
    %7 = arith.addi %2, %6 : vector<1x256xi32>
    %c0_i32 = arith.constant 0 : i32
    %8 = vector.broadcast %c0_i32 : i32 to vector<1x256xi32>
    %9 = arith.cmpi sge, %7, %8 : vector<1x256xi32>
    %c-1_i32_4 = arith.constant -1 : i32
    %10 = vector.broadcast %c-1_i32_4 : i32 to vector<1x256xi32>
    %11 = arith.addi %2, %10 : vector<1x256xi32>
    %c16_i32 = arith.constant 16 : i32
    %12 = vector.broadcast %c16_i32 : i32 to vector<1x256xi32>
    %13 = arith.cmpi slt, %11, %12 : vector<1x256xi32>
    %14 = arith.andi %9, %13 : vector<1x256xi1>
    %cst = arith.constant 0.000000e+00 : f32
    %15 = vector.broadcast %cst : f32 to vector<4x256xf32>
    %16 = vector.shape_cast %14 : vector<1x256xi1> to vector<1x256xi1>
    %17 = vector.broadcast %16 : vector<1x256xi1> to vector<4x256xi1>
    %18 = arith.select %17, %5, %15 : vector<4x256xi1>, vector<4x256xf32>
    %c0_5 = arith.constant 0 : index
    %c0_6 = arith.constant 0 : index
    %19 = vector.load %arg6[%c0_5, %c0_6] : memref<36x256xf32, #tpu.memory_space<vmem>>, vector<4x256xf32>
    tpu.vector_store %arg6[%c0_5, %c0_6], %18 {strides = array<i32>} : memref<36x256xf32, #tpu.memory_space<vmem>>, vector<4x256xf32>,
    %20 = vector.extract_strided_slice %1 {offsets = [0, 240], sizes = [4, 16], strides = [1, 1]} : vector<4x256xf32> to vector<4x16xf32>
    %21 = vector.extract_strided_slice %1 {offsets = [0, 0], sizes = [4, 240], strides = [1, 1]} : vector<4x256xf32> to vector<4x240xf32>
    %22 = tpu.concatenate %20, %21 in 1 : vector<4x16xf32>, vector<4x240xf32> -> vector<4x256xf32>
    %c4 = arith.constant 4 : index
    %c0_7 = arith.constant 0 : index
    %23 = vector.load %arg6[%c4, %c0_7] : memref<36x256xf32, #tpu.memory_space<vmem>>, vector<4x256xf32>
    tpu.vector_store %arg6[%c4, %c0_7], %22 {strides = array<i32>} : memref<36x256xf32, #tpu.memory_space<vmem>>, vector<4x256xf32>,
    %24 = vector.extract_strided_slice %1 {offsets = [0, 241], sizes = [4, 15], strides = [1, 1]} : vector<4x256xf32> to vector<4x15xf32>
    %25 = vector.extract_strided_slice %1 {offsets = [0, 0], sizes = [4, 241], strides = [1, 1]} : vector<4x256xf32> to vector<4x241xf32>
    %26 = tpu.concatenate %24, %25 in 1 : vector<4x15xf32>, vector<4x241xf32> -> vector<4x256xf32>
    %c1_i32 = arith.constant 1 : i32
    %27 = vector.broadcast %c1_i32 : i32 to vector<1x256xi32>
    %28 = arith.addi %2, %27 : vector<1x256xi32>
    %c0_i32_8 = arith.constant 0 : i32
    %29 = vector.broadcast %c0_i32_8 : i32 to vector<1x256xi32>
    %30 = arith.cmpi sge, %28, %29 : vector<1x256xi32>
    %c1_i32_9 = arith.constant 1 : i32
    %31 = vector.broadcast %c1_i32_9 : i32 to vector<1x256xi32>
    %32 = arith.addi %2, %31 : vector<1x256xi32>
    %c16_i32_10 = arith.constant 16 : i32
    %33 = vector.broadcast %c16_i32_10 : i32 to vector<1x256xi32>
    %34 = arith.cmpi slt, %32, %33 : vector<1x256xi32>
    %35 = arith.andi %30, %34 : vector<1x256xi1>
    %cst_11 = arith.constant 0.000000e+00 : f32
    %36 = vector.broadcast %cst_11 : f32 to vector<4x256xf32>
    %37 = vector.shape_cast %35 : vector<1x256xi1> to vector<1x256xi1>
    %38 = vector.broadcast %37 : vector<1x256xi1> to vector<4x256xi1>
    %39 = arith.select %38, %26, %36 : vector<4x256xi1>, vector<4x256xf32>
    %c8 = arith.constant 8 : index
    %c0_12 = arith.constant 0 : index
    %40 = vector.load %arg6[%c8, %c0_12] : memref<36x256xf32, #tpu.memory_space<vmem>>, vector<4x256xf32>
    tpu.vector_store %arg6[%c8, %c0_12], %39 {strides = array<i32>} : memref<36x256xf32, #tpu.memory_space<vmem>>, vector<4x256xf32>,
    %41 = vector.extract_strided_slice %1 {offsets = [0, 255], sizes = [4, 1], strides = [1, 1]} : vector<4x256xf32> to vector<4x1xf32>
    %42 = vector.extract_strided_slice %1 {offsets = [0, 0], sizes = [4, 255], strides = [1, 1]} : vector<4x256xf32> to vector<4x255xf32>
    %43 = tpu.concatenate %41, %42 in 1 : vector<4x1xf32>, vector<4x255xf32> -> vector<4x256xf32>
    %c-1_i32_13 = arith.constant -1 : i32
    %44 = vector.broadcast %c-1_i32_13 : i32 to vector<1x256xi32>
    %45 = arith.addi %2, %44 : vector<1x256xi32>
    %c0_i32_14 = arith.constant 0 : i32
    %46 = vector.broadcast %c0_i32_14 : i32 to vector<1x256xi32>
    %47 = arith.cmpi sge, %45, %46 : vector<1x256xi32>
    %c-1_i32_15 = arith.constant -1 : i32
    %48 = vector.broadcast %c-1_i32_15 : i32 to vector<1x256xi32>
    %49 = arith.addi %2, %48 : vector<1x256xi32>
    %c16_i32_16 = arith.constant 16 : i32
    %50 = vector.broadcast %c16_i32_16 : i32 to vector<1x256xi32>
    %51 = arith.cmpi slt, %49, %50 : vector<1x256xi32>
    %52 = arith.andi %47, %51 : vector<1x256xi1>
    %cst_17 = arith.constant 0.000000e+00 : f32
    %53 = vector.broadcast %cst_17 : f32 to vector<4x256xf32>
    %54 = vector.shape_cast %52 : vector<1x256xi1> to vector<1x256xi1>
    %55 = vector.broadcast %54 : vector<1x256xi1> to vector<4x256xi1>
    %56 = arith.select %55, %43, %53 : vector<4x256xi1>, vector<4x256xf32>
    %c12 = arith.constant 12 : index
    %c0_18 = arith.constant 0 : index
    %57 = vector.load %arg6[%c12, %c0_18] : memref<36x256xf32, #tpu.memory_space<vmem>>, vector<4x256xf32>
    tpu.vector_store %arg6[%c12, %c0_18], %56 {strides = array<i32>} : memref<36x256xf32, #tpu.memory_space<vmem>>, vector<4x256xf32>,
    %c16 = arith.constant 16 : index
    %c0_19 = arith.constant 0 : index
    %58 = vector.load %arg6[%c16, %c0_19] : memref<36x256xf32, #tpu.memory_space<vmem>>, vector<4x256xf32>
    tpu.vector_store %arg6[%c16, %c0_19], %1 {strides = array<i32>} : memref<36x256xf32, #tpu.memory_space<vmem>>, vector<4x256xf32>,
    %59 = vector.extract_strided_slice %1 {offsets = [0, 1], sizes = [4, 255], strides = [1, 1]} : vector<4x256xf32> to vector<4x255xf32>
    %60 = vector.extract_strided_slice %1 {offsets = [0, 0], sizes = [4, 1], strides = [1, 1]} : vector<4x256xf32> to vector<4x1xf32>
    %61 = tpu.concatenate %59, %60 in 1 : vector<4x255xf32>, vector<4x1xf32> -> vector<4x256xf32>
    %c1_i32_20 = arith.constant 1 : i32
    %62 = vector.broadcast %c1_i32_20 : i32 to vector<1x256xi32>
    %63 = arith.addi %2, %62 : vector<1x256xi32>
    %c0_i32_21 = arith.constant 0 : i32
    %64 = vector.broadcast %c0_i32_21 : i32 to vector<1x256xi32>
    %65 = arith.cmpi sge, %63, %64 : vector<1x256xi32>
    %c1_i32_22 = arith.constant 1 : i32
    %66 = vector.broadcast %c1_i32_22 : i32 to vector<1x256xi32>
    %67 = arith.addi %2, %66 : vector<1x256xi32>
    %c16_i32_23 = arith.constant 16 : i32
    %68 = vector.broadcast %c16_i32_23 : i32 to vector<1x256xi32>
    %69 = arith.cmpi slt, %67, %68 : vector<1x256xi32>
    %70 = arith.andi %65, %69 : vector<1x256xi1>
    %cst_24 = arith.constant 0.000000e+00 : f32
    %71 = vector.broadcast %cst_24 : f32 to vector<4x256xf32>
    %72 = vector.shape_cast %70 : vector<1x256xi1> to vector<1x256xi1>
    %73 = vector.broadcast %72 : vector<1x256xi1> to vector<4x256xi1>
    %74 = arith.select %73, %61, %71 : vector<4x256xi1>, vector<4x256xf32>
    %c20 = arith.constant 20 : index
    %c0_25 = arith.constant 0 : index
    %75 = vector.load %arg6[%c20, %c0_25] : memref<36x256xf32, #tpu.memory_space<vmem>>, vector<4x256xf32>
    tpu.vector_store %arg6[%c20, %c0_25], %74 {strides = array<i32>} : memref<36x256xf32, #tpu.memory_space<vmem>>, vector<4x256xf32>,
    %76 = vector.extract_strided_slice %1 {offsets = [0, 15], sizes = [4, 241], strides = [1, 1]} : vector<4x256xf32> to vector<4x241xf32>
    %77 = vector.extract_strided_slice %1 {offsets = [0, 0], sizes = [4, 15], strides = [1, 1]} : vector<4x256xf32> to vector<4x15xf32>
    %78 = tpu.concatenate %76, %77 in 1 : vector<4x241xf32>, vector<4x15xf32> -> vector<4x256xf32>
    %c-1_i32_26 = arith.constant -1 : i32
    %79 = vector.broadcast %c-1_i32_26 : i32 to vector<1x256xi32>
    %80 = arith.addi %2, %79 : vector<1x256xi32>
    %c0_i32_27 = arith.constant 0 : i32
    %81 = vector.broadcast %c0_i32_27 : i32 to vector<1x256xi32>
    %82 = arith.cmpi sge, %80, %81 : vector<1x256xi32>
    %c-1_i32_28 = arith.constant -1 : i32
    %83 = vector.broadcast %c-1_i32_28 : i32 to vector<1x256xi32>
    %84 = arith.addi %2, %83 : vector<1x256xi32>
    %c16_i32_29 = arith.constant 16 : i32
    %85 = vector.broadcast %c16_i32_29 : i32 to vector<1x256xi32>
    %86 = arith.cmpi slt, %84, %85 : vector<1x256xi32>
    %87 = arith.andi %82, %86 : vector<1x256xi1>
    %cst_30 = arith.constant 0.000000e+00 : f32
    %88 = vector.broadcast %cst_30 : f32 to vector<4x256xf32>
    %89 = vector.shape_cast %87 : vector<1x256xi1> to vector<1x256xi1>
    %90 = vector.broadcast %89 : vector<1x256xi1> to vector<4x256xi1>
    %91 = arith.select %90, %78, %88 : vector<4x256xi1>, vector<4x256xf32>
    %c24 = arith.constant 24 : index
    %c0_31 = arith.constant 0 : index
    %92 = vector.load %arg6[%c24, %c0_31] : memref<36x256xf32, #tpu.memory_space<vmem>>, vector<4x256xf32>
    tpu.vector_store %arg6[%c24, %c0_31], %91 {strides = array<i32>} : memref<36x256xf32, #tpu.memory_space<vmem>>, vector<4x256xf32>,
    %93 = vector.extract_strided_slice %1 {offsets = [0, 16], sizes = [4, 240], strides = [1, 1]} : vector<4x256xf32> to vector<4x240xf32>
    %94 = vector.extract_strided_slice %1 {offsets = [0, 0], sizes = [4, 16], strides = [1, 1]} : vector<4x256xf32> to vector<4x16xf32>
    %95 = tpu.concatenate %93, %94 in 1 : vector<4x240xf32>, vector<4x16xf32> -> vector<4x256xf32>
    %c28 = arith.constant 28 : index
    %c0_32 = arith.constant 0 : index
    %96 = vector.load %arg6[%c28, %c0_32] : memref<36x256xf32, #tpu.memory_space<vmem>>, vector<4x256xf32>
    tpu.vector_store %arg6[%c28, %c0_32], %95 {strides = array<i32>} : memref<36x256xf32, #tpu.memory_space<vmem>>, vector<4x256xf32>,
    %97 = vector.extract_strided_slice %1 {offsets = [0, 17], sizes = [4, 239], strides = [1, 1]} : vector<4x256xf32> to vector<4x239xf32>
    %98 = vector.extract_strided_slice %1 {offsets = [0, 0], sizes = [4, 17], strides = [1, 1]} : vector<4x256xf32> to vector<4x17xf32>
    %99 = tpu.concatenate %97, %98 in 1 : vector<4x239xf32>, vector<4x17xf32> -> vector<4x256xf32>
    %c1_i32_33 = arith.constant 1 : i32
    %100 = vector.broadcast %c1_i32_33 : i32 to vector<1x256xi32>
    %101 = arith.addi %2, %100 : vector<1x256xi32>
    %c0_i32_34 = arith.constant 0 : i32
    %102 = vector.broadcast %c0_i32_34 : i32 to vector<1x256xi32>
    %103 = arith.cmpi sge, %101, %102 : vector<1x256xi32>
    %c1_i32_35 = arith.constant 1 : i32
    %104 = vector.broadcast %c1_i32_35 : i32 to vector<1x256xi32>
    %105 = arith.addi %2, %104 : vector<1x256xi32>
    %c16_i32_36 = arith.constant 16 : i32
    %106 = vector.broadcast %c16_i32_36 : i32 to vector<1x256xi32>
    %107 = arith.cmpi slt, %105, %106 : vector<1x256xi32>
    %108 = arith.andi %103, %107 : vector<1x256xi1>
    %cst_37 = arith.constant 0.000000e+00 : f32
    %109 = vector.broadcast %cst_37 : f32 to vector<4x256xf32>
    %110 = vector.shape_cast %108 : vector<1x256xi1> to vector<1x256xi1>
    %111 = vector.broadcast %110 : vector<1x256xi1> to vector<4x256xi1>
    %112 = arith.select %111, %99, %109 : vector<4x256xi1>, vector<4x256xf32>
    %c32 = arith.constant 32 : index
    %c0_38 = arith.constant 0 : index
    %113 = vector.load %arg6[%c32, %c0_38] : memref<36x256xf32, #tpu.memory_space<vmem>>, vector<4x256xf32>
    tpu.vector_store %arg6[%c32, %c0_38], %112 {strides = array<i32>} : memref<36x256xf32, #tpu.memory_space<vmem>>, vector<4x256xf32>,
    %c0_39 = arith.constant 0 : index
    %c0_40 = arith.constant 0 : index
    %114 = vector.load %arg2[%c0_39, %c0_40] : memref<8x36xf32, #tpu.memory_space<vmem>>, vector<8x36xf32>
    %c0_41 = arith.constant 0 : index
    %c0_42 = arith.constant 0 : index
    %115 = vector.load %arg6[%c0_41, %c0_42] : memref<36x256xf32, #tpu.memory_space<vmem>>, vector<36x256xf32>
    %cst_43 = arith.constant dense<0.000000e+00> : vector<8x256xf32>
    %116 = tpu.matmul %114, %115, %cst_43 {dimension_numbers = #tpu.dot_dimension_numbers<[1], [0], [0], [1], [0, 0, 1, 1], [], []>} : vector<8x36xf32>, vector<36x256xf32>, vector<8x256xf32> -> vector<8x256xf32>
    %c0_44 = arith.constant 0 : index
    %c0_45 = arith.constant 0 : index
    %117 = vector.load %arg3[%c0_44, %c0_45] : memref<8x1xf32, #tpu.memory_space<vmem>>, vector<8x1xf32>
    %118 = vector.broadcast %117 : vector<8x1xf32> to vector<8x256xf32>
    %119 = arith.addf %116, %118 : vector<8x256xf32>
    %c0_46 = arith.constant 0 : index
    %c0_47 = arith.constant 0 : index
    %c0_48 = arith.constant 0 : index
    %120 = vector.load %arg5[%c0_46, %c0_47, %c0_48] : memref<1x8x256xf32, #tpu.memory_space<vmem>>, vector<1x8x256xf32>
    %121 = vector.shape_cast %120 : vector<1x8x256xf32> to vector<8x256xf32>
    %122 = vector.shape_cast %119 : vector<8x256xf32> to vector<1x8x256xf32>
    tpu.vector_store %arg5[%c0_46, %c0_47, %c0_48], %122 {strides = array<i32>} : memref<1x8x256xf32, #tpu.memory_space<vmem>>, vector<1x8x256xf32>,
    return
  }
  func.func @transform_0(%arg0: i32) -> (i32, i32, i32) {
    %c0_i32 = arith.constant 0 : i32
    %c0_i32_0 = arith.constant 0 : i32
    %c0_i32_1 = arith.constant 0 : i32
    return %arg0, %c0_i32, %c0_i32_0 : i32, i32, i32
  }
  func.func @transform_1(%arg0: i32) -> (i32, i32) {
    %c0_i32 = arith.constant 0 : i32
    %c0_i32_0 = arith.constant 0 : i32
    %c0_i32_1 = arith.constant 0 : i32
    return %c0_i32, %c0_i32_0 : i32, i32
  }
  func.func @transform_2(%arg0: i32) -> (i32, i32) {
    %c0_i32 = arith.constant 0 : i32
    %c0_i32_0 = arith.constant 0 : i32
    %c0_i32_1 = arith.constant 0 : i32
    return %c0_i32, %c0_i32_0 : i32, i32
  }
  func.func @transform_3(%arg0: i32) -> (i32, i32) {
    %c0_i32 = arith.constant 0 : i32
    %c0_i32_0 = arith.constant 0 : i32
    %c0_i32_1 = arith.constant 0 : i32
    return %c0_i32, %c0_i32_0 : i32, i32
  }
  func.func @transform_4(%arg0: i32) -> (i32, i32, i32) {
    %c0_i32 = arith.constant 0 : i32
    %c0_i32_0 = arith.constant 0 : i32
    %c0_i32_1 = arith.constant 0 : i32
    return %arg0, %c0_i32, %c0_i32_0 : i32, i32, i32
  }
}

</mosaic_0001>

<llo_original>
// kernel: zero_padded_cylindrical_conv2d.1
$region0: #{zero_padded_cylindrical_conv2d.1}
  #allocation0 [shape = 'u32[]', space=smem, size = 0x4, offset = 0x4, fixed_abs, tag = 'smem constant byte address 0x4 - core index']
  #allocation1 [shape = 'u32[144,128]{1,0:T(1,128)}', space=vmem, size = 0x12000, scoped, tag = 'internal scratch']
  #allocation2 [shape = 'f32[36,256]{1,0:T(8,128)}', space=vmem, size = 0xa000, scoped, tag = 'scratch operand']
  %s0 = inlined_call_operand.vmem [shape: f32[2,4,256], index: 0, kind: input, shape index: {}]
  %s1 = inlined_call_operand.vmem [shape: f32[8,36], index: 1, kind: input, shape index: {}]
  %s2 = inlined_call_operand.vmem [shape: f32[8,1], index: 2, kind: input, shape index: {}]
  %s3 = inlined_call_operand.vmem [shape: s32[1,256], index: 3, kind: input, shape index: {}]
  %s4 = inlined_call_operand.vmem [shape: f32[2,8,256], index: 4, kind: output, shape index: {}]
  %s5 = sld [smem:[#allocation0]]
  $region49: #{zero_padded_cylindrical_conv2d.1} parent=0
    _
  %s7 = ssub.s32 1, %s5
  %s8 = scalar_select 0, %s7, %s5
  loop: start=0, step=1, limit=4
  $region2: #{zero_padded_cylindrical_conv2d.1} parent=0 // loop_pre_header
    _
  $region3: #{zero_padded_cylindrical_conv2d.1} parent=0 // loop_header
    %s10 = sphi 0, %s14
    %p11 = scmp.ge.s32.totalorder %s10, 4
    %s20 = sphi 0, %s22
    %s23 = sphi 0, %s20
    %s24 = sphi 0, %s23
    %s40 = sphi 0, %s24
    %s44 = sphi 0, %s44
    %s46 = sphi 0, %s44
    %s47 = sphi 0, %s46
    %s61 = sphi 0, %s47
    %s65 = sphi 0, %s65
    %s67 = sphi 0, %s65
    %s68 = sphi 0, %s67
    %s82 = sphi 0, %s68
    %s86 = sphi 0, %s86
    %s88 = sphi 0, %s86
    %s89 = sphi 0, %s88
    %s103 = sphi 0, %s89
    %s109 = sphi 0, %s111
    %s112 = sphi 0, %s109
    %s113 = sphi 0, %s112
    %s129 = sphi 0, %s113
  $region4: #{zero_padded_cylindrical_conv2d.1} parent=0 // loop_header_branch
    %13 = sbr.rel (%p11) target = $region8
  $region5: #{zero_padded_cylindrical_conv2d.1} parent=0 // loop_body
    %s15 = ssub.s32 %s10, 1
    %s16 = ssub.s32 %s10, 2
    %s17 = sadd.s32 %s10, 1
    %s18 = ssub.s32 %s10, %s17
    %p19 = scmp.eq.s32.totalorder %s18, 0
    %s21 = sadd.s32 %s20, 1
    %s22 = scalar_select %p19, %s20, %s21
    %p25 = pneg %p19
    %p26 = scmp.eq.s32.totalorder %s10, 1
    %p27 = por %p25, %p26
    %p28 = scmp.ne.s32.totalorder %s20, %s23
    %p29 = scmp.eq.s32.totalorder %s10, 0
    %p30 = por %p28, %p29
    %p31 = scmp.ne.s32.totalorder %s20, %s23
    %p32 = scmp.eq.s32.totalorder %s15, 1
    %p33 = por %p31, %p32
    %p34 = scmp.ne.s32.totalorder %s23, %s24
    %p35 = scmp.eq.s32.totalorder %s15, 0
    %p36 = por %p34, %p35
    %p37 = scmp.ne.s32.totalorder %s23, %s24
    %p38 = scmp.eq.s32.totalorder %s16, 1
    %p39 = por %p37, %p38
    %p41 = scmp.ne.s32.totalorder %s24, %s40
    %p42 = scmp.eq.s32.totalorder %s16, 0
    %p43 = por %p41, %p42
    %s45 = sadd.s32 %s44, 1
    %p48 = scmp.eq.s32.totalorder %s10, 1
    %p49 = scmp.ne.s32.totalorder %s44, %s46
    %p50 = scmp.eq.s32.totalorder %s10, 0
    %p51 = por %p49, %p50
    %p52 = scmp.ne.s32.totalorder %s44, %s46
    %p53 = scmp.eq.s32.totalorder %s15, 1
    %p54 = por %p52, %p53
    %p55 = scmp.ne.s32.totalorder %s46, %s47
    %p56 = scmp.eq.s32.totalorder %s15, 0
    %p57 = por %p55, %p56
    %p58 = scmp.ne.s32.totalorder %s46, %s47
    %p59 = scmp.eq.s32.totalorder %s16, 1
    %p60 = por %p58, %p59
    %p62 = scmp.ne.s32.totalorder %s47, %s61
    %p63 = scmp.eq.s32.totalorder %s16, 0
    %p64 = por %p62, %p63
    %s66 = sadd.s32 %s65, 1
    %p69 = scmp.eq.s32.totalorder %s10, 1
    %p70 = scmp.ne.s32.totalorder %s65, %s67
    %p71 = scmp.eq.s32.totalorder %s10, 0
    %p72 = por %p70, %p71
    %p73 = scmp.ne.s32.totalorder %s65, %s67
    %p74 = scmp.eq.s32.totalorder %s15, 1
    %p75 = por %p73, %p74
    %p76 = scmp.ne.s32.totalorder %s67, %s68
    %p77 = scmp.eq.s32.totalorder %s15, 0
    %p78 = por %p76, %p77
    %p79 = scmp.ne.s32.totalorder %s67, %s68
    %p80 = scmp.eq.s32.totalorder %s16, 1
    %p81 = por %p79, %p80
    %p83 = scmp.ne.s32.totalorder %s68, %s82
    %p84 = scmp.eq.s32.totalorder %s16, 0
    %p85 = por %p83, %p84
    %s87 = sadd.s32 %s86, 1
    %p90 = scmp.eq.s32.totalorder %s10, 1
    %p91 = scmp.ne.s32.totalorder %s86, %s88
    %p92 = scmp.eq.s32.totalorder %s10, 0
    %p93 = por %p91, %p92
    %p94 = scmp.ne.s32.totalorder %s86, %s88
    %p95 = scmp.eq.s32.totalorder %s15, 1
    %p96 = por %p94, %p95
    %p97 = scmp.ne.s32.totalorder %s88, %s89
    %p98 = scmp.eq.s32.totalorder %s15, 0
    %p99 = por %p97, %p98
    %p100 = scmp.ne.s32.totalorder %s88, %s89
    %p101 = scmp.eq.s32.totalorder %s16, 1
    %p102 = por %p100, %p101
    %p104 = scmp.ne.s32.totalorder %s89, %s103
    %p105 = scmp.eq.s32.totalorder %s16, 0
    %p106 = por %p104, %p105
    %s107 = ssub.s32 %s10, %s17
    %p108 = scmp.eq.s32.totalorder %s107, 0
    %s110 = sadd.s32 %s109, 1
    %s111 = scalar_select %p108, %s109, %s110
    %p114 = pneg %p108
    %p115 = scmp.eq.s32.totalorder %s10, 1
    %p116 = por %p114, %p115
    %p117 = scmp.ne.s32.totalorder %s109, %s112
    %p118 = scmp.eq.s32.totalorder %s10, 0
    %p119 = por %p117, %p118
    %p120 = scmp.ne.s32.totalorder %s109, %s112
    %p121 = scmp.eq.s32.totalorder %s15, 1
    %p122 = por %p120, %p121
    %p123 = scmp.ne.s32.totalorder %s112, %s113
    %p124 = scmp.eq.s32.totalorder %s15, 0
    %p125 = por %p123, %p124
    %p126 = scmp.ne.s32.totalorder %s112, %s113
    %p127 = scmp.eq.s32.totalorder %s16, 1
    %p128 = por %p126, %p127
    %p130 = scmp.ne.s32.totalorder %s113, %s129
    %p131 = scmp.eq.s32.totalorder %s16, 0
    %p132 = por %p130, %p131
    %p133 = scmp.le.s32.totalorder 1, %s10
    %p134 = scmp.lt.s32.totalorder %s10, 3
    %p135 = pnand %p133, %p134
    %p136 = pneg %p135
    // Predicated region
    $region9: #{zero_padded_cylindrical_conv2d.1} parent=5 // pred_check
      _
    $region10: #{zero_padded_cylindrical_conv2d.1} parent=5 // pred_check_branch
      %138 = sbr.rel (%p135) target = $region12
    $region11: #{zero_padded_cylindrical_conv2d.1} parent=5 // pred_region
      %s139 = ssub.s32 %s10, 1
      // Predicated region
      $region13: #{zero_padded_cylindrical_conv2d.1} parent=11 // pred_check
        %p140 = pneg %p57
      $region14: #{zero_padded_cylindrical_conv2d.1} parent=11 // pred_check_branch
        %142 = sbr.rel (%p140) target = $region16
      $region15: #{zero_padded_cylindrical_conv2d.1} parent=11 // pred_region
        _
      $region16: #{zero_padded_cylindrical_conv2d.1} parent=11 // pred_fallthru
        _
      // Predicated region
      $region17: #{zero_padded_cylindrical_conv2d.1} parent=11 // pred_check
        %p143 = pneg %p78
      $region18: #{zero_padded_cylindrical_conv2d.1} parent=11 // pred_check_branch
        %145 = sbr.rel (%p143) target = $region20
      $region19: #{zero_padded_cylindrical_conv2d.1} parent=11 // pred_region
        _
      $region20: #{zero_padded_cylindrical_conv2d.1} parent=11 // pred_fallthru
        _
      // Predicated region
      $region21: #{zero_padded_cylindrical_conv2d.1} parent=11 // pred_check
        %p146 = pneg %p99
      $region22: #{zero_padded_cylindrical_conv2d.1} parent=11 // pred_check_branch
        %148 = sbr.rel (%p146) target = $region24
      $region23: #{zero_padded_cylindrical_conv2d.1} parent=11 // pred_region
        _
      $region24: #{zero_padded_cylindrical_conv2d.1} parent=11 // pred_fallthru
        _
    $region12: #{zero_padded_cylindrical_conv2d.1} parent=5 // pred_fallthru
      _
    %p149 = scmp.lt.s32.totalorder %s10, 2
    // Predicated region
    $region25: #{zero_padded_cylindrical_conv2d.1} parent=5 // pred_check
      %p150 = pneg %p149
    $region26: #{zero_padded_cylindrical_conv2d.1} parent=5 // pred_check_branch
      %152 = sbr.rel (%p150) target = $region28
    $region27: #{zero_padded_cylindrical_conv2d.1} parent=5 // pred_region
      // Predicated region
      $region29: #{zero_padded_cylindrical_conv2d.1} parent=27 // pred_check
        %p153 = pneg %p30
      $region30: #{zero_padded_cylindrical_conv2d.1} parent=27 // pred_check_branch
        %155 = sbr.rel (%p153) target = $region32
      $region31: #{zero_padded_cylindrical_conv2d.1} parent=27 // pred_region
        %p156 = scmp.lt.s32.totalorder %s10, 1
        %s157 = scalar_select %p156, %s10, 1
        %s158 = smul.addr %s157, 2
        %s159 = smul.addr %s158, 4
        %s160 = scalar_lea.vmem %s0, %s159
      $region32: #{zero_padded_cylindrical_conv2d.1} parent=27 // pred_fallthru
        _
    $region28: #{zero_padded_cylindrical_conv2d.1} parent=5 // pred_fallthru
      _
    %p161 = scmp.le.s32.totalorder 1, %s10
    %p162 = scmp.lt.s32.totalorder %s10, 3
    %p163 = pnand %p161, %p162
    %p164 = pneg %p163
    // Predicated region
    $region33: #{zero_padded_cylindrical_conv2d.1} parent=5 // pred_check
      _
    $region34: #{zero_padded_cylindrical_conv2d.1} parent=5 // pred_check_branch
      %166 = sbr.rel (%p163) target = $region36
    $region35: #{zero_padded_cylindrical_conv2d.1} parent=5 // pred_region
      %s167 = ssub.s32 %s10, 1
      %p168 = scmp.lt.s32.totalorder %s15, 1
      %s169 = scalar_select %p168, %s15, 1
      %s170 = smul.addr %s169, 2
      %s171 = smul.addr %s170, 4
      %s172 = scalar_lea.vmem %s0, %s171
      %p173 = pneg %p36
      %p174 = pneg %p33
      %p175 = pneg %p57
      %p176 = pneg %p54
      %p177 = pneg %p78
      %p178 = pneg %p75
      %p179 = pneg %p99
      %p180 = pneg %p96
      %p181 = pneg %p125
      %p182 = pneg %p122
      %p183 = scmp.lt.s32.totalorder %s15, 1
      %s184 = scalar_select %p183, %s15, 1
      %s185 = smul.addr %s184, 2
      %s186 = smul.addr %s185, 8
      %s187 = scalar_lea.vmem %s4, %s186
      %p188 = scmp.lt.s32.totalorder %s15, 1
      %s189 = scalar_select %p188, %s15, 1
      %s190 = smul.addr %s189, 2
      %s191 = smul.addr %s190, 4
      %s192 = scalar_lea.vmem %s0, %s191
      %p193 = scmp.lt.s32.totalorder %s15, 1
      %s194 = scalar_select %p193, %s15, 1
      %s195 = smul.addr %s194, 2
      %s196 = smul.addr %s195, 8
      %s197 = scalar_lea.vmem %s4, %s196
      %v198 = vld [vmem:[%s192] sm:$0xff]
      %v199 = vld [vmem:[%s3] sm:$0x3]
      %v201 = vcombine.high %v198, %v198
      %202 = vrot.lane.b32.xlu0 %v201, 17
      %v203 = vpop.permute.xlu0 %202
      %205 = vrot.lane.b32.xlu0 %v198, 17
      %v206 = vpop.permute.xlu0 %205
      %vm207 = vcmask 138240
      %v208 = vsel %vm207, %v206, %v203
      %v211 = vsel %vm207, %v203, %v206
      %v212 = vadd.s32 %v199, 4294967295
      %vm213 = vcmp.ge.s32.totalorder %v212, 0
      %vm214 = vcmp.lt.s32.totalorder %v212, 16
      %vm215 = vmand %vm213, %vm214
      %v216 = vsel %vm215, 1, 0
      %v217 = vlaneseq
      %v218 = vshrl.u32 %v217, 7
      %v219 = vsub.s32 0, %v218
      %v220 = vrot.slane %v216, %v219
      %v221 = vlaneseq
      %v222 = vshrl.u32 %v221, 7
      %v223 = vsub.s32 1, %v222
      %v224 = vrot.slane %v216, %v223
      %vm225 = vcmp.eq.s32.totalorder %v220, 1
      %vm226 = vcmp.eq.s32.totalorder %v224, 1
      %v227 = vsel %vm225, %v211, 0.0
      %v228 = vsel %vm226, %v208, 0.0
      %229 = vst [vmem:[#allocation2] sm:$0xf] %v227
      %230 = vst [vmem:[#allocation2 + $0x8] sm:$0xf] %v228
      %231 = vrot.lane.b32.xlu0 %v201, 16
      %v232 = vpop.permute.xlu0 %231
      %234 = vrot.lane.b32.xlu0 %v198, 16
      %v235 = vpop.permute.xlu0 %234
      %vm236 = vcmask 130048
      %v237 = vsel %vm236, %v235, %v232
      %v239 = vsel %vm236, %v232, %v235
      %v241 = vrot.slane %v239, 4
      %v242 = vrot.slane %v237, 4
      %245 = vst [vmem:[#allocation2] sm:$0xf0] %v241
      %246 = vst [vmem:[#allocation2 + $0x8] sm:$0xf0] %v242
      %247 = vrot.lane.b32.xlu0 %v201, 15
      %v248 = vpop.permute.xlu0 %247
      %250 = vrot.lane.b32.xlu0 %v198, 15
      %v251 = vpop.permute.xlu0 %250
      %vm252 = vcmask 121856
      %v253 = vsel %vm252, %v251, %v248
      %v256 = vsel %vm252, %v248, %v251
      %v257 = vadd.s32 %v199, 1
      %vm258 = vcmp.ge.s32.totalorder %v257, 0
      %vm259 = vcmp.lt.s32.totalorder %v257, 16
      %vm260 = vmand %vm258, %vm259
      %v261 = vsel %vm260, 1, 0
      %v262 = vlaneseq
      %v263 = vshrl.u32 %v262, 7
      %v264 = vsub.s32 0, %v263
      %v265 = vrot.slane %v261, %v264
      %v266 = vlaneseq
      %v267 = vshrl.u32 %v266, 7
      %v268 = vsub.s32 1, %v267
      %v269 = vrot.slane %v261, %v268
      %vm270 = vcmp.eq.s32.totalorder %v265, 1
      %vm271 = vcmp.eq.s32.totalorder %v269, 1
      %v272 = vsel %vm270, %v256, 0.0
      %v273 = vsel %vm271, %v253, 0.0
      %274 = vst [vmem:[#allocation2 + $0x10] sm:$0xf] %v272
      %275 = vst [vmem:[#allocation2 + $0x18] sm:$0xf] %v273
      %276 = vrot.lane.b32.xlu0 %v201, 1
      %v277 = vpop.permute.xlu0 %276
      %279 = vrot.lane.b32.xlu0 %v198, 1
      %v280 = vpop.permute.xlu0 %279
      %vm281 = vcmask 7168
      %v282 = vsel %vm281, %v280, %v277
      %v285 = vsel %vm281, %v277, %v280
      %v286 = vsel %vm225, %v285, 0.0
      %v287 = vsel %vm226, %v282, 0.0
      %v290 = vrot.slane %v286, 4
      %v291 = vrot.slane %v287, 4
      %294 = vst [vmem:[#allocation2 + $0x10] sm:$0xf0] %v290
      %295 = vst [vmem:[#allocation2 + $0x18] sm:$0xf0] %v291
      %297 = vst [vmem:[#allocation2 + $0x20] sm:$0xf] %v198
      %298 = vst [vmem:[#allocation2 + $0x28] sm:$0xf] %v201
      %299 = vrot.lane.b32.xlu0 %v198, 127
      %v300 = vpop.permute.xlu0 %299
      %301 = vrot.lane.b32.xlu0 %v201, 127
      %v302 = vpop.permute.xlu0 %301
      %vm303 = vcmask 1039360
      %v304 = vsel %vm303, %v300, %v302
      %v308 = vsel %vm303, %v302, %v300
      %v309 = vsel %vm270, %v304, 0.0
      %v310 = vsel %vm271, %v308, 0.0
      %v313 = vrot.slane %v309, 4
      %v314 = vrot.slane %v310, 4
      %317 = vst [vmem:[#allocation2 + $0x20] sm:$0xf0] %v313
      %318 = vst [vmem:[#allocation2 + $0x28] sm:$0xf0] %v314
      %319 = vrot.lane.b32.xlu0 %v198, 113
      %v320 = vpop.permute.xlu0 %319
      %321 = vrot.lane.b32.xlu0 %v201, 113
      %v322 = vpop.permute.xlu0 %321
      %vm323 = vcmask 924672
      %v324 = vsel %vm323, %v320, %v322
      %v328 = vsel %vm323, %v322, %v320
      %v329 = vsel %vm225, %v324, 0.0
      %v330 = vsel %vm226, %v328, 0.0
      %331 = vst [vmem:[#allocation2 + $0x30] sm:$0xf] %v329
      %332 = vst [vmem:[#allocation2 + $0x38] sm:$0xf] %v330
      %333 = vrot.lane.b32.xlu0 %v198, 112
      %v334 = vpop.permute.xlu0 %333
      %335 = vrot.lane.b32.xlu0 %v201, 112
      %v336 = vpop.permute.xlu0 %335
      %vm337 = vcmask 916480
      %v338 = vsel %vm337, %v334, %v336
      %v341 = vsel %vm337, %v336, %v334
      %v343 = vrot.slane %v338, 4
      %v344 = vrot.slane %v341, 4
      %347 = vst [vmem:[#allocation2 + $0x30] sm:$0xf0] %v343
      %348 = vst [vmem:[#allocation2 + $0x38] sm:$0xf0] %v344
      %349 = vrot.lane.b32.xlu0 %v198, 111
      %v350 = vpop.permute.xlu0 %349
      %351 = vrot.lane.b32.xlu0 %v201, 111
      %v352 = vpop.permute.xlu0 %351
      %vm353 = vcmask 908288
      %v354 = vsel %vm353, %v350, %v352
      %v358 = vsel %vm353, %v352, %v350
      %v359 = vsel %vm270, %v354, 0.0
      %v360 = vsel %vm271, %v358, 0.0
      %361 = vst [vmem:[#allocation2 + $0x40] sm:$0xf] %v359
      %362 = vst [vmem:[#allocation2 + $0x48] sm:$0xf] %v360
      %v363 = vld [vmem:[%s1] sm:$0xff]
      %v364 = vld [vmem:[#allocation2] sm:$0xff]
      %v365 = vld [vmem:[#allocation2 + $0x8] sm:$0xff]
      %v366 = vld [vmem:[#allocation2 + $0x10] sm:$0xff]
      %v367 = vld [vmem:[#allocation2 + $0x18] sm:$0xff]
      %v368 = vld [vmem:[#allocation2 + $0x20] sm:$0xff]
      %v369 = vld [vmem:[#allocation2 + $0x28] sm:$0xff]
      %v370 = vld [vmem:[#allocation2 + $0x30] sm:$0xff]
      %v371 = vld [vmem:[#allocation2 + $0x38] sm:$0xff]
      %v372 = vld [vmem:[#allocation2 + $0x40] sm:$0xf]
      %v373 = vld [vmem:[#allocation2 + $0x48] sm:$0xf]
      %v374 = vld [vmem:[%s2] sm:$0xff]
      %376 = vset.pattern.permute.xlu0 0
      %377 = vperm.xlu0 %376, %v374
      %v378 = vpop.permute.xlu0 %377
      %vm380 = vcmask 293888
      %v382 = vsel %vm380, %v363, 0
      %vm384 = vcmask 1043456
      %v386 = vsel %vm384, %v372, 0
      %v389 = vsel %vm384, %v373, 0
      %391 = vmatprep.subr.mxu0 %v365
      %392 = vmatpush1.msra.mxu0 %v364
      %393 = vmatprep.subr.mxu0 %v367
      %394 = vmatpush1.msra.mxu0 %v366
      %395 = vmatprep.subr.mxu0 %v369
      %396 = vmatpush1.msra.mxu0 %v368
      %397 = vmatprep.subr.mxu0 %v371
      %398 = vmatpush1.msra.mxu0 %v370
      %399 = vmatprep.subr.mxu0 %v389
      %400 = vmatpush1.msra.mxu0 %v386
      %401 = vmatprep.subr.mxu0 0.0
      %402 = vmatpush1.msra.mxu0 0.0
      %403 = vmatprep.subr.mxu0 0.0
      %404 = vmatpush1.msra.mxu0 0.0
      %405 = vmatprep.subr.mxu0 0.0
      %406 = vmatpush1.msra.mxu0 0.0
      %407 = vmatprep.subr.mxu0 0.0
      %408 = vmatpush1.msra.mxu0 0.0
      %409 = vmatprep.subr.mxu0 0.0
      %410 = vmatpush1.msra.mxu0 0.0
      %411 = vmatprep.subr.mxu0 0.0
      %412 = vmatpush1.msra.mxu0 0.0
      %413 = vmatprep.subr.mxu0 0.0
      %414 = vmatpush1.msra.mxu0 0.0
      %415 = vmatprep.subr.mxu0 0.0
      %416 = vmatpush1.msra.mxu0 0.0
      %417 = vmatprep.subr.mxu0 0.0
      %418 = vmatpush1.msra.mxu0 0.0
      %419 = vmatprep.subr.mxu0 0.0
      %420 = vmatpush1.msra.mxu0 0.0
      %421 = vmatprep.subr.mxu0 0.0
      %422 = vmatpush1.msra.mxu0 0.0
      %423 = vmatprep.subr.mxu0 0.0
      %424 = vmatpush1.msra.mxu0 0.0
      %425 = vmatprep.subr.mxu0 0.0
      %426 = vmatpush1.msra.mxu0 0.0
      %427 = vmatprep.subr.mxu0 0.0
      %428 = vmatpush1.msra.mxu0 0.0
      %429 = vmatprep.subr.mxu0 0.0
      %430 = vmatpush1.msra.mxu0 0.0
      %431 = vmatprep.subr.mxu0 0.0
      %432 = vmatpush1.msra.mxu0 0.0
      %433 = vmatprep.subr.mxu0 0.0
      %434 = vmatpush1.msra.mxu0 0.0
      %435 = vmatprep.subr.mxu0 0.0
      %436 = vmatpush1.msra.mxu0 0.0
      %437 = vmatprep.subr.mxu0 0.0
      %438 = vmatpush1.msra.mxu0 0.0
      %439 = vmatprep.subr.mxu0 0.0
      %440 = vmatpush1.msra.mxu0 0.0
      %441 = vmatprep.subr.mxu0 0.0
      %442 = vmatpush1.msra.mxu0 0.0
      %443 = vmatprep.subr.mxu0 0.0
      %444 = vmatpush1.msra.mxu0 0.0
      %445 = vmatprep.subr.mxu0 0.0
      %446 = vmatpush1.msra.mxu0 0.0
      %447 = vmatprep.subr.mxu0 0.0
      %448 = vmatpush1.msra.mxu0 0.0
      %449 = vmatprep.subr.mxu0 0.0
      %450 = vmatpush1.msra.mxu0 0.0
      %451 = vmatprep.subr.mxu0 0.0
      %452 = vmatpush1.msra.mxu0 0.0
      %453 = vmatprep.subr.mxu0 0.0
      %454 = vmatpush1.msra.mxu0 0.0
      %455 = vmatprep.mubr.f32.mxu0 0.0
      %456 = vmatmul.mubr.f32.gmra.mrb[0].mxu0 %v382
      %v457 = vpop.f32.mrb[0].mxu0
      %v458 = vadd.f32 %v378, %v457
      %v459 = vpop.f32.mrb[0].mxu0
      %v460 = vadd.f32 %v378, %v459
      %461 = vdwg.mxu0
      %462 = vst [vmem:[%s197] sm:$0xff] %v458
      %463 = vst [vmem:[%s197 + $0x8] sm:$0xff] %v460
      %p464 = scmp.lt.s32.totalorder %s15, 1
      %s465 = scalar_select %p464, %s15, 1
      %s466 = smul.addr %s465, 2
      %s467 = smul.addr %s466, 8
      %s468 = scalar_lea.vmem %s4, %s467
      // Predicated region
      $region37: #{zero_padded_cylindrical_conv2d.1} parent=35 // pred_check
        %p469 = pneg %p122
      $region38: #{zero_padded_cylindrical_conv2d.1} parent=35 // pred_check_branch
        %471 = sbr.rel (%p469) target = $region40
      $region39: #{zero_padded_cylindrical_conv2d.1} parent=35 // pred_region
        _
      $region40: #{zero_padded_cylindrical_conv2d.1} parent=35 // pred_fallthru
        _
    $region36: #{zero_padded_cylindrical_conv2d.1} parent=5 // pred_fallthru
      _
    %p472 = scmp.le.s32.totalorder 2, %s10
    // Predicated region
    $region41: #{zero_padded_cylindrical_conv2d.1} parent=5 // pred_check
      %p473 = pneg %p472
    $region42: #{zero_padded_cylindrical_conv2d.1} parent=5 // pred_check_branch
      %475 = sbr.rel (%p473) target = $region44
    $region43: #{zero_padded_cylindrical_conv2d.1} parent=5 // pred_region
      %s476 = ssub.s32 %s10, 2
      // Predicated region
      $region45: #{zero_padded_cylindrical_conv2d.1} parent=43 // pred_check
        %p477 = pneg %p128
      $region46: #{zero_padded_cylindrical_conv2d.1} parent=43 // pred_check_branch
        %479 = sbr.rel (%p477) target = $region48
      $region47: #{zero_padded_cylindrical_conv2d.1} parent=43 // pred_region
        %p480 = scmp.lt.s32.totalorder %s16, 1
        %s481 = scalar_select %p480, %s16, 1
        %s482 = smul.addr %s481, 2
        %s483 = smul.addr %s482, 8
        %s484 = scalar_lea.vmem %s4, %s483
      $region48: #{zero_padded_cylindrical_conv2d.1} parent=43 // pred_fallthru
        _
    $region44: #{zero_padded_cylindrical_conv2d.1} parent=5 // pred_fallthru
      _
  $region6: #{zero_padded_cylindrical_conv2d.1} parent=0 // loop_footer
    %s14 = sadd.s32 1, %s10
  $region7: #{zero_padded_cylindrical_conv2d.1} parent=0 // loop_footer_branch
    %9 = sbr.rel target = $region3
  $region8: #{zero_padded_cylindrical_conv2d.1} parent=0 // loop_exit
    _

</llo_original>
